<compile_context>
chip_gen: v7x
topology: tpu7x:2x2x1
jax: 0.10.0
libtpu: 0.0.40
codegen_flags: <defaults>
</compile_context>

<pallas_src>
import functools

import jax
import jax.numpy as jnp
from jax.experimental import pallas as pl
from jax.experimental.pallas import tpu as pltpu

HIDDEN = 32
LANES = 128
NODE_TYPES = ("user", "group", "item")
ET_UG = ("user", "in", "group")
ET_GU = ("group", "has", "user")
ET_UI = ("user", "buys", "item")
ET_IU = ("item", "bought_by", "user")
EDGE_TYPES = (ET_UG, ET_GU, ET_UI, ET_IU)

_VMEM = pl.BlockSpec(memory_space=pltpu.MemorySpace.VMEM)


# ---------------------------------------------------------------------------
# The single fused Pallas kernel
# ---------------------------------------------------------------------------
def _fused_kernel(cnt_ref, invd_ref, emb_ref, w_ref, b_ref, pw_ref, out_ref,
                  *, n_user, n_group, n_item, hidden):
    """conv1 -> ReLU -> conv2 -> predictor, restricted to what feeds out['group'].

    Operand slabs (all VMEM resident, one DMA each):
      cnt_ref : (n_user+n_group, max(n_item,n_user)) bf16  raw edge counts
                  rows [0:n_user)            = counts item->user
                  rows [n_user:n_user+n_grp) = counts user->group
      invd_ref: (n_user+n_group, 1) f32   inverse degree per dst row
      emb_ref : (n_user+n_item, hidden) bf16   [emb_user ; emb_item]
      w_ref   : (5*hidden, hidden) bf16   [w_ru1; wl1_iu; wl1_ug; wl2_ug; wr2_ug]
                  (all pre-transposed to [in, out]; w_ru1 is the exact fold of
                   the two layer-1 dst=user root weights)
      b_ref   : (3, n_out) f32   row0=b_u1[:hidden] row1=b_g1[:hidden]
                                  row2=pred_b (+ folded b_g2), lane-padded
      pw_ref  : (hidden, n_out) bf16  predictor weight, lane-padded
    """
    f32 = jnp.float32
    bf16 = jnp.bfloat16

    # Static sub-views (sublane offsets are multiples of 8/16 -> relayout-safe).
    cnt_iu = cnt_ref[0:n_user, 0:n_item]                  # (n_user, n_item)
    cnt_ug = cnt_ref[n_user:n_user + n_group, 0:n_user]   # (n_group, n_user)
    inv_u = invd_ref[0:n_user, :]                         # (n_user, 1)
    inv_g = invd_ref[n_user:n_user + n_group, :]          # (n_group, 1)
    emb_u = emb_ref[0:n_user, :]                          # (n_user, hidden)
    emb_i = emb_ref[n_user:n_user + n_item, :]            # (n_item, hidden)
    w_ru1 = w_ref[0 * hidden:1 * hidden, :]
    wl1_iu = w_ref[1 * hidden:2 * hidden, :]
    wl1_ug = w_ref[2 * hidden:3 * hidden, :]
    wl2_ug = w_ref[3 * hidden:4 * hidden, :]
    wr2_ug = w_ref[4 * hidden:5 * hidden, :]
    b_u1 = b_ref[0:1, 0:hidden]
    b_g1 = b_ref[1:2, 0:hidden]
    pred_b = b_ref[2:3, :]

    def mm(a, b):
        # bf16 MXU inputs, f32 accumulation; bias/ReLU/normalize stay in f32.
        return jnp.dot(a.astype(bf16), b, preferred_element_type=f32)

    # ---- layer 1, dst = user -------------------------------------------------
    # ('group','has','user'): src (group emb) is zero -> neighbour term = bias
    # (folded into b_u1).  ('item','bought_by','user'): full conv.  The two
    # root weights are folded into w_ru1 at pack time (exact).
    agg_iu = mm(cnt_iu, emb_i) * inv_u                    # mean over item nbrs
    h_u = jnp.maximum(mm(emb_u, w_ru1) + mm(agg_iu, wl1_iu) + b_u1, 0.0)

    # ---- layer 1, dst = group ------------------------------------------------
    # ('user','in','group'): dst (group emb) is zero -> root matmul dropped.
    agg_ug = mm(cnt_ug, emb_u) * inv_g
    h_g = jnp.maximum(mm(agg_ug, wl1_ug) + b_g1, 0.0)

    # ---- layer 2, dst = group ------------------------------------------------
    agg_ug2 = mm(cnt_ug, h_u) * inv_g
    g2 = mm(agg_ug2, wl2_ug) + mm(h_g, wr2_ug)            # b_g2 folded into pred_b

    # ---- predictor; single unmasked 128-lane store ----------------------------
    out_ref[...] = mm(g2, pw_ref[...]) + pred_b


def fused_forward(cnt_slab, inv_deg, emb_cat, pk, n_user, n_group, n_item):
    kernel = functools.partial(_fused_kernel, n_user=n_user, n_group=n_group,
                               n_item=n_item, hidden=HIDDEN)
    return pl.pallas_call(
        kernel,
        out_shape=jax.ShapeDtypeStruct((n_group, pk["n_out"]), jnp.float32),
        in_specs=[_VMEM] * 6,
        out_specs=_VMEM,
    )(cnt_slab, inv_deg, emb_cat, pk["w_slab"], pk["b_slab"], pk["pred_wt"])


# ---------------------------------------------------------------------------
# One-time parameter packing: transpose to [in, out], fold exact sums,
# sublane-stack into slabs, cast MXU operands to bf16, lane-pad predictor.
# ---------------------------------------------------------------------------
def pack_params(params, hidden=HIDDEN):
    c1, c2 = params["conv1"], params["conv2"]
    n_item = params["pred_w"].shape[0]
    n_out = pl.cdiv(n_item, LANES) * LANES

    # Weight slab: the two layer-1 dst=user root weights folded exactly
    # (U @ Wa.T + U @ Wb.T == U @ (Wa + Wb).T).
    w_slab = jnp.concatenate([
        (c1[ET_GU]["w_r"] + c1[ET_IU]["w_r"]).T,   # w_ru1
        c1[ET_IU]["w_l"].T,                        # wl1_iu
        c1[ET_UG]["w_l"].T,                        # wl1_ug
        c2[ET_UG]["w_l"].T,                        # wl2_ug
        c2[ET_UG]["w_r"].T,                        # wr2_ug
    ], axis=0).astype(jnp.bfloat16)                # (5*hidden, hidden)

    # Bias slab: b_u1 (folded), b_g1, predictor bias with b_g2 folded in
    # (exact in f32 at pack time: (g2 + b_g2) @ W.T + b == g2 @ W.T + (b_g2 @ W.T + b)).
    b_u1 = c1[ET_GU]["b_l"] + c1[ET_IU]["b_l"]
    b_g1 = c1[ET_UG]["b_l"]
    pred_b_fold = params["pred_b"] + c2[ET_UG]["b_l"] @ params["pred_w"].T
    b_slab = jnp.zeros((3, n_out), jnp.float32)
    b_slab = b_slab.at[0, :hidden].set(b_u1)
    b_slab = b_slab.at[1, :hidden].set(b_g1)
    b_slab = b_slab.at[2, :n_item].set(pred_b_fold)

    # Predictor weight, lane-padded to a 128 multiple, bf16.
    pred_wt = (jnp.zeros((hidden, n_out), jnp.float32)
               .at[:, :n_item].set(params["pred_w"].T)).astype(jnp.bfloat16)

    return {"w_slab": w_slab, "b_slab": b_slab, "pred_wt": pred_wt,
            "n_item": n_item, "n_out": n_out}


# ---------------------------------------------------------------------------
# Glue (plain JAX): embedding gather, raw edge-count / degree construction
# ---------------------------------------------------------------------------
def build_counts(edge_index, n_src, n_dst):
    # counts[i, j] = #edges j->i; deg[i] = sum_j counts[i, j]
    # TODO(synk): data-dependent scatter-add (and the embedding row gather)
    # stay in plain JAX; at scale this should become CSR/segment-sum rather
    # than a dense count matrix.
    src, dst = edge_index[0], edge_index[1]
    counts = jnp.zeros((n_dst, n_src), jnp.float32).at[dst, src].add(1.0)
    deg = counts.sum(axis=1, keepdims=True)
    return counts, deg


def base_gr_forward(emb_tables, packed, x, edge_index, num_node_info):
    n_user = num_node_info["user"]
    n_group = num_node_info["group"]
    n_item = num_node_info["item"]

    emb_u = jnp.take(emb_tables["user"], x["user"], axis=0)
    emb_i = jnp.take(emb_tables["item"], x["item"], axis=0)
    # 'group' embedding is multiplied by 0 in the reference forward -> never gathered.
    emb_cat = jnp.concatenate([emb_u, emb_i], axis=0).astype(jnp.bfloat16)

    cnt_iu, deg_u = build_counts(edge_index[ET_IU], n_item, n_user)
    cnt_ug, deg_g = build_counts(edge_index[ET_UG], n_user, n_group)
    width = max(n_item, n_user)
    cnt_slab = jnp.zeros((n_user + n_group, width), jnp.float32)
    cnt_slab = cnt_slab.at[:n_user, :n_item].set(cnt_iu)
    cnt_slab = cnt_slab.at[n_user:, :n_user].set(cnt_ug)
    cnt_slab = cnt_slab.astype(jnp.bfloat16)       # small integer counts: exact

    inv_deg = jnp.concatenate([1.0 / jnp.maximum(deg_u, 1.0),
                               1.0 / jnp.maximum(deg_g, 1.0)], axis=0)  # f32

    out_pad = fused_forward(cnt_slab, inv_deg, emb_cat, packed,
                            n_user, n_group, n_item)
    return {"group": out_pad[:, :packed["n_item"]]}


# ---------------------------------------------------------------------------
# Pure-JAX reference (full, un-optimized hetero forward) for validation
# ---------------------------------------------------------------------------
def build_mean_adj(edge_index, n_src, n_dst):
    counts, deg = build_counts(edge_index, n_src, n_dst)
    return counts / jnp.maximum(deg, 1.0)


def reference_forward(params, x, edge_index, num_node_info):
    hp = jax.lax.Precision.HIGHEST

    def mm(a, b):
        return jnp.dot(a, b, precision=hp)

    emb = {}
    for t in NODE_TYPES:
        e = jnp.take(params["emb"][t], x[t], axis=0)
        if t == "group":
            e = e * 0.0
        emb[t] = e
    adjs = {et: build_mean_adj(edge_index[et], num_node_info[et[0]], num_node_info[et[2]])
            for et in EDGE_TYPES}

    def hetero_conv(layer, feat):
        out = {}
        for et in EDGE_TYPES:
            s, _, d = et
            p = params[layer][et]
            y = mm(mm(adjs[et], feat[s]), p["w_l"].T) + p["b_l"] + mm(feat[d], p["w_r"].T)
            out[d] = y if d not in out else out[d] + y
        return out

    h1 = {t: jnp.maximum(v, 0.0) for t, v in hetero_conv("conv1", emb).items()}
    rep = hetero_conv("conv2", h1)
    return mm(rep["group"], params["pred_w"].T) + params["pred_b"]


# ---------------------------------------------------------------------------
# Deterministic parameter init (PyTorch [out, in] convention, as in the module)
# ---------------------------------------------------------------------------
def init_params(key, num_node_info, hidden):
    params = {"emb": {}, "conv1": {}, "conv2": {}}

    def nxt():
        nonlocal key
        key, sub = jax.random.split(key)
        return sub

    for t in NODE_TYPES:
        params["emb"][t] = (
            jax.random.normal(nxt(), (num_node_info[t], hidden), jnp.float32) * 0.1
        )
    scale = 1.0 / float(hidden) ** 0.5
    for layer in ("conv1", "conv2"):
        for et in EDGE_TYPES:
            params[layer][et] = {
                "w_l": jax.random.normal(nxt(), (hidden, hidden), jnp.float32) * scale,
                "b_l": jnp.zeros((hidden,), jnp.float32),
                "w_r": jax.random.normal(nxt(), (hidden, hidden), jnp.float32) * scale,
            }
    n_item = num_node_info["item"]
    params["pred_w"] = jax.random.normal(nxt(), (n_item, hidden), jnp.float32) * scale
    params["pred_b"] = jnp.zeros((n_item,), jnp.float32)
    return params


if __name__ == "__main__":
    key = jax.random.PRNGKey(0)
    num_node_info = {"user": 16, "group": 8, "item": 24}

    k_param, k_edge = jax.random.split(key)
    params = init_params(k_param, num_node_info, HIDDEN)
    packed = pack_params(params)  # one-time weight transpose/fold/stack/pad

    # x[node_type] = node ids fed to the per-type nn.Embedding
    x = {t: jnp.arange(num_node_info[t], dtype=jnp.int32) for t in NODE_TYPES}

    # deterministic random bipartite edges + reverse edge types
    edge_index = {}
    k = k_edge
    for et, ne in ((ET_UG, 32), (ET_UI, 48)):
        s, _, d = et
        k, k1, k2 = jax.random.split(k, 3)
        src = jax.random.randint(k1, (ne,), 0, num_node_info[s], dtype=jnp.int32)
        dst = jax.random.randint(k2, (ne,), 0, num_node_info[d], dtype=jnp.int32)
        edge_index[et] = jnp.stack([src, dst])
    edge_index[ET_GU] = edge_index[ET_UG][::-1]
    edge_index[ET_IU] = edge_index[ET_UI][::-1]

    out = base_gr_forward(params["emb"], packed, x, edge_index, num_node_info)
    jax.block_until_ready(out["group"])
    assert out["group"].shape == (num_node_info["group"], num_node_info["item"])
    assert out["group"].dtype == jnp.float32

    ref = reference_forward(params, x, edge_index, num_node_info)
    max_err = float(jnp.max(jnp.abs(out["group"] - ref)))
    assert max_err < 1e-2, f"fused kernel mismatch vs reference: max_err={max_err}"

    print("KERNEL_OK")
</pallas_src>

<mosaic_0001>
module attributes {stable_mosaic.version = 11 : i64} {
  func.func @_fused_kernel(%arg0: memref<24x24xbf16, #tpu.memory_space<vmem>>, %arg1: memref<24x1xf32, #tpu.memory_space<vmem>>, %arg2: memref<40x32xbf16, #tpu.memory_space<vmem>>, %arg3: memref<160x32xbf16, #tpu.memory_space<vmem>>, %arg4: memref<3x128xf32, #tpu.memory_space<vmem>>, %arg5: memref<32x128xbf16, #tpu.memory_space<vmem>>, %arg6: memref<8x128xf32, #tpu.memory_space<vmem>>) attributes {dimension_semantics = [], scalar_prefetch = 0 : i64, scratch_operands = 0 : i64, tpu.core_type = #tpu.core_type<tc>} {
    %c0 = arith.constant 0 : index
    %c0_0 = arith.constant 0 : index
    %0 = vector.load %arg0[%c0, %c0_0] : memref<24x24xbf16, #tpu.memory_space<vmem>>, vector<16x24xbf16>
    %c16 = arith.constant 16 : index
    %c0_1 = arith.constant 0 : index
    %1 = vector.load %arg0[%c16, %c0_1] : memref<24x24xbf16, #tpu.memory_space<vmem>>, vector<8x16xbf16>
    %c0_2 = arith.constant 0 : index
    %c0_3 = arith.constant 0 : index
    %2 = vector.load %arg1[%c0_2, %c0_3] : memref<24x1xf32, #tpu.memory_space<vmem>>, vector<16x1xf32>
    %c16_4 = arith.constant 16 : index
    %c0_5 = arith.constant 0 : index
    %3 = vector.load %arg1[%c16_4, %c0_5] : memref<24x1xf32, #tpu.memory_space<vmem>>, vector<8x1xf32>
    %c0_6 = arith.constant 0 : index
    %c0_7 = arith.constant 0 : index
    %4 = vector.load %arg2[%c0_6, %c0_7] : memref<40x32xbf16, #tpu.memory_space<vmem>>, vector<16x32xbf16>
    %c16_8 = arith.constant 16 : index
    %c0_9 = arith.constant 0 : index
    %5 = vector.load %arg2[%c16_8, %c0_9] : memref<40x32xbf16, #tpu.memory_space<vmem>>, vector<24x32xbf16>
    %c0_10 = arith.constant 0 : index
    %c0_11 = arith.constant 0 : index
    %6 = vector.load %arg3[%c0_10, %c0_11] : memref<160x32xbf16, #tpu.memory_space<vmem>>, vector<32x32xbf16>
    %c32 = arith.constant 32 : index
    %c0_12 = arith.constant 0 : index
    %7 = vector.load %arg3[%c32, %c0_12] : memref<160x32xbf16, #tpu.memory_space<vmem>>, vector<32x32xbf16>
    %c64 = arith.constant 64 : index
    %c0_13 = arith.constant 0 : index
    %8 = vector.load %arg3[%c64, %c0_13] : memref<160x32xbf16, #tpu.memory_space<vmem>>, vector<32x32xbf16>
    %c96 = arith.constant 96 : index
    %c0_14 = arith.constant 0 : index
    %9 = vector.load %arg3[%c96, %c0_14] : memref<160x32xbf16, #tpu.memory_space<vmem>>, vector<32x32xbf16>
    %c128 = arith.constant 128 : index
    %c0_15 = arith.constant 0 : index
    %10 = vector.load %arg3[%c128, %c0_15] : memref<160x32xbf16, #tpu.memory_space<vmem>>, vector<32x32xbf16>
    %c0_16 = arith.constant 0 : index
    %c0_17 = arith.constant 0 : index
    %11 = vector.load %arg4[%c0_16, %c0_17] : memref<3x128xf32, #tpu.memory_space<vmem>>, vector<1x32xf32>
    %c1 = arith.constant 1 : index
    %c0_18 = arith.constant 0 : index
    %12 = vector.load %arg4[%c1, %c0_18] : memref<3x128xf32, #tpu.memory_space<vmem>>, vector<1x32xf32>
    %c2 = arith.constant 2 : index
    %c0_19 = arith.constant 0 : index
    %13 = vector.load %arg4[%c2, %c0_19] : memref<3x128xf32, #tpu.memory_space<vmem>>, vector<1x128xf32>
    %cst = arith.constant dense<0.000000e+00> : vector<16x32xf32>
    %14 = tpu.matmul %0, %5, %cst {dimension_numbers = #tpu.dot_dimension_numbers<[1], [0], [0], [1], [0, 0, 1, 1], [], []>} : vector<16x24xbf16>, vector<24x32xbf16>, vector<16x32xf32> -> vector<16x32xf32>
    %15 = vector.broadcast %2 : vector<16x1xf32> to vector<16x32xf32>
    %16 = arith.mulf %14, %15 : vector<16x32xf32>
    %cst_20 = arith.constant dense<0.000000e+00> : vector<16x32xf32>
    %17 = tpu.matmul %4, %6, %cst_20 {dimension_numbers = #tpu.dot_dimension_numbers<[1], [0], [0], [1], [0, 0, 1, 1], [], []>} : vector<16x32xbf16>, vector<32x32xbf16>, vector<16x32xf32> -> vector<16x32xf32>
    %18 = arith.truncf %16 : vector<16x32xf32> to vector<16x32xbf16>
    %cst_21 = arith.constant dense<0.000000e+00> : vector<16x32xf32>
    %19 = tpu.matmul %18, %7, %cst_21 {dimension_numbers = #tpu.dot_dimension_numbers<[1], [0], [0], [1], [0, 0, 1, 1], [], []>} : vector<16x32xbf16>, vector<32x32xbf16>, vector<16x32xf32> -> vector<16x32xf32>
    %20 = arith.addf %17, %19 : vector<16x32xf32>
    %21 = vector.broadcast %11 : vector<1x32xf32> to vector<16x32xf32>
    %22 = arith.addf %20, %21 : vector<16x32xf32>
    %cst_22 = arith.constant 0.000000e+00 : f32
    %23 = vector.broadcast %cst_22 : f32 to vector<16x32xf32>
    %24 = arith.maximumf %22, %23 : vector<16x32xf32>
    %cst_23 = arith.constant dense<0.000000e+00> : vector<8x32xf32>
    %25 = tpu.matmul %1, %4, %cst_23 {dimension_numbers = #tpu.dot_dimension_numbers<[1], [0], [0], [1], [0, 0, 1, 1], [], []>} : vector<8x16xbf16>, vector<16x32xbf16>, vector<8x32xf32> -> vector<8x32xf32>
    %26 = vector.broadcast %3 : vector<8x1xf32> to vector<8x32xf32>
    %27 = arith.mulf %25, %26 : vector<8x32xf32>
    %28 = arith.truncf %27 : vector<8x32xf32> to vector<8x32xbf16>
    %cst_24 = arith.constant dense<0.000000e+00> : vector<8x32xf32>
    %29 = tpu.matmul %28, %8, %cst_24 {dimension_numbers = #tpu.dot_dimension_numbers<[1], [0], [0], [1], [0, 0, 1, 1], [], []>} : vector<8x32xbf16>, vector<32x32xbf16>, vector<8x32xf32> -> vector<8x32xf32>
    %30 = vector.broadcast %12 : vector<1x32xf32> to vector<8x32xf32>
    %31 = arith.addf %29, %30 : vector<8x32xf32>
    %cst_25 = arith.constant 0.000000e+00 : f32
    %32 = vector.broadcast %cst_25 : f32 to vector<8x32xf32>
    %33 = arith.maximumf %31, %32 : vector<8x32xf32>
    %cst_26 = arith.constant dense<0.000000e+00> : vector<8x32xf32>
    %34 = tpu.matmul %1, %24, %cst_26 {dimension_numbers = #tpu.dot_dimension_numbers<[1], [0], [0], [1], [0, 0, 1, 1], [], []>} : vector<8x16xbf16>, vector<16x32xf32>, vector<8x32xf32> -> vector<8x32xf32>
    %35 = vector.broadcast %3 : vector<8x1xf32> to vector<8x32xf32>
    %36 = arith.mulf %34, %35 : vector<8x32xf32>
    %37 = arith.truncf %36 : vector<8x32xf32> to vector<8x32xbf16>
    %cst_27 = arith.constant dense<0.000000e+00> : vector<8x32xf32>
    %38 = tpu.matmul %37, %9, %cst_27 {dimension_numbers = #tpu.dot_dimension_numbers<[1], [0], [0], [1], [0, 0, 1, 1], [], []>} : vector<8x32xbf16>, vector<32x32xbf16>, vector<8x32xf32> -> vector<8x32xf32>
    %39 = arith.truncf %33 : vector<8x32xf32> to vector<8x32xbf16>
    %cst_28 = arith.constant dense<0.000000e+00> : vector<8x32xf32>
    %40 = tpu.matmul %39, %10, %cst_28 {dimension_numbers = #tpu.dot_dimension_numbers<[1], [0], [0], [1], [0, 0, 1, 1], [], []>} : vector<8x32xbf16>, vector<32x32xbf16>, vector<8x32xf32> -> vector<8x32xf32>
    %41 = arith.addf %38, %40 : vector<8x32xf32>
    %c0_29 = arith.constant 0 : index
    %c0_30 = arith.constant 0 : index
    %42 = vector.load %arg5[%c0_29, %c0_30] : memref<32x128xbf16, #tpu.memory_space<vmem>>, vector<32x128xbf16>
    %43 = arith.truncf %41 : vector<8x32xf32> to vector<8x32xbf16>
    %cst_31 = arith.constant dense<0.000000e+00> : vector<8x128xf32>
    %44 = tpu.matmul %43, %42, %cst_31 {dimension_numbers = #tpu.dot_dimension_numbers<[1], [0], [0], [1], [0, 0, 1, 1], [], []>} : vector<8x32xbf16>, vector<32x128xbf16>, vector<8x128xf32> -> vector<8x128xf32>
    %45 = vector.broadcast %13 : vector<1x128xf32> to vector<8x128xf32>
    %46 = arith.addf %44, %45 : vector<8x128xf32>
    %c0_32 = arith.constant 0 : index
    %c0_33 = arith.constant 0 : index
    %47 = vector.load %arg6[%c0_32, %c0_33] : memref<8x128xf32, #tpu.memory_space<vmem>>, vector<8x128xf32>
    tpu.vector_store %arg6[%c0_32, %c0_33], %46 {strides = array<i32>} : memref<8x128xf32, #tpu.memory_space<vmem>>, vector<8x128xf32>,
    return
  }
}

</mosaic_0001>

<llo_original>
// kernel: tpu_custom_call.1
$region0: #{tpu_custom_call.1}
  #allocation0 [shape = 'u32[]', space=smem, size = 0x4, offset = 0x4, fixed_abs, tag = 'smem constant byte address 0x4 - core index']
  #allocation1 [shape = 'u32[144,128]{1,0:T(1,128)}', space=vmem, size = 0x12000, scoped, tag = 'internal scratch']
  %s0 = inlined_call_operand.vmem [shape: bf16[24,24], index: 0, kind: input, shape index: {}]
  %s1 = inlined_call_operand.vmem [shape: f32[24,1], index: 1, kind: input, shape index: {}]
  %s2 = inlined_call_operand.vmem [shape: bf16[40,32], index: 2, kind: input, shape index: {}]
  %s3 = inlined_call_operand.vmem [shape: bf16[160,32], index: 3, kind: input, shape index: {}]
  %s4 = inlined_call_operand.vmem [shape: f32[3,128], index: 4, kind: input, shape index: {}]
  %s5 = inlined_call_operand.vmem [shape: bf16[32,128], index: 5, kind: input, shape index: {}]
  %s6 = inlined_call_operand.hbm [shape: f32[8,128], index: 6, kind: output, shape index: {}]
  %s7 = sld [smem:[#allocation0]]
  $region34: #{tpu_custom_call.1} parent=0
    _
  %s9 = ssub.s32 1, %s7
  %s10 = scalar_select 0, %s9, %s7
  $region1: #{tpu_custom_call.1} parent=0
    #allocation2 [shape = 'u8[4096]{0}', space=vmem, size = 0x1000, scoped, tag = 'output window, operand 0, single buffered']
    #allocation3 [shape = 's32[1]{0}', space=sflag, size = 0x4, scoped, tag = 'scoped memory for tpu_custom_call.1']
    %11 = vsyncpa [#allocation3], 0
    // Predicated region
    $region2: #{tpu_custom_call.1} parent=1 // pred_check
      _
    $region3: #{tpu_custom_call.1} parent=1 // pred_check_branch
      %13 = sbr.rel (0) target = $region5
    $region4: #{tpu_custom_call.1} parent=1 // pred_region
      _
    $region5: #{tpu_custom_call.1} parent=1 // pred_fallthru
      _
    // Predicated region
    $region6: #{tpu_custom_call.1} parent=1 // pred_check
      _
    $region7: #{tpu_custom_call.1} parent=1 // pred_check_branch
      %15 = sbr.rel (0) target = $region9
    $region8: #{tpu_custom_call.1} parent=1 // pred_region
      _
    $region9: #{tpu_custom_call.1} parent=1 // pred_fallthru
      _
    // Predicated region
    $region10: #{tpu_custom_call.1} parent=1 // pred_check
      _
    $region11: #{tpu_custom_call.1} parent=1 // pred_check_branch
      %17 = sbr.rel (0) target = $region13
    $region12: #{tpu_custom_call.1} parent=1 // pred_region
      _
    $region13: #{tpu_custom_call.1} parent=1 // pred_fallthru
      _
    // Predicated region
    $region14: #{tpu_custom_call.1} parent=1 // pred_check
      _
    $region15: #{tpu_custom_call.1} parent=1 // pred_check_branch
      %19 = sbr.rel (0) target = $region17
    $region16: #{tpu_custom_call.1} parent=1 // pred_region
      _
    $region17: #{tpu_custom_call.1} parent=1 // pred_fallthru
      _
    // Predicated region
    $region18: #{tpu_custom_call.1} parent=1 // pred_check
      _
    $region19: #{tpu_custom_call.1} parent=1 // pred_check_branch
      %21 = sbr.rel (0) target = $region21
    $region20: #{tpu_custom_call.1} parent=1 // pred_region
      _
    $region21: #{tpu_custom_call.1} parent=1 // pred_fallthru
      _
    // Predicated region
    $region22: #{tpu_custom_call.1} parent=1 // pred_check
      _
    $region23: #{tpu_custom_call.1} parent=1 // pred_check_branch
      %23 = sbr.rel (0) target = $region25
    $region24: #{tpu_custom_call.1} parent=1 // pred_region
      _
    $region25: #{tpu_custom_call.1} parent=1 // pred_fallthru
      _
    %v25 = vld [vmem:[%s0] sm:$0xf]
    %v26 = vld [vmem:[%s0 + $0x4] sm:$0xf]
    %v27 = vld [vmem:[%s0 + $0x8] sm:$0xf]
    %v28 = vld [vmem:[%s1] sm:$0xff]
    %v29 = vld [vmem:[%s1 + $0x8] sm:$0xff]
    %v30 = vld [vmem:[%s1 + $0x10] sm:$0xff]
    %v31 = vld [vmem:[%s2] sm:$0xf]
    %v32 = vld [vmem:[%s2 + $0x4] sm:$0xf]
    %v33 = vld [vmem:[%s2 + $0x8] sm:$0xf]
    %v34 = vld [vmem:[%s2 + $0xc] sm:$0xf]
    %v35 = vld [vmem:[%s2 + $0x10] sm:$0xf]
    %v36 = vld [vmem:[%s3] sm:$0xf]
    %v37 = vld [vmem:[%s3 + $0x4] sm:$0xf]
    %v38 = vld [vmem:[%s3 + $0x8] sm:$0xf]
    %v39 = vld [vmem:[%s3 + $0xc] sm:$0xf]
    %v40 = vld [vmem:[%s3 + $0x10] sm:$0xf]
    %v41 = vld [vmem:[%s3 + $0x14] sm:$0xf]
    %v42 = vld [vmem:[%s3 + $0x18] sm:$0xf]
    %v43 = vld [vmem:[%s3 + $0x1c] sm:$0xf]
    %v44 = vld [vmem:[%s3 + $0x20] sm:$0xf]
    %v45 = vld [vmem:[%s3 + $0x24] sm:$0xf]
    %v46 = vld [vmem:[%s3 + $0x28] sm:$0xf]
    %v47 = vld [vmem:[%s3 + $0x2c] sm:$0xf]
    %v48 = vld [vmem:[%s3 + $0x30] sm:$0xf]
    %v49 = vld [vmem:[%s3 + $0x34] sm:$0xf]
    %v50 = vld [vmem:[%s3 + $0x38] sm:$0xf]
    %v51 = vld [vmem:[%s3 + $0x3c] sm:$0xf]
    %v52 = vld [vmem:[%s3 + $0x40] sm:$0xf]
    %v53 = vld [vmem:[%s3 + $0x44] sm:$0xf]
    %v54 = vld [vmem:[%s3 + $0x48] sm:$0xf]
    %v55 = vld [vmem:[%s3 + $0x4c] sm:$0xf]
    %v56 = vld [vmem:[%s4] sm:$0x1]
    %v57 = vld [vmem:[%s4 + $0x1] sm:$0x1]
    %v58 = vld [vmem:[%s4 + $0x2] sm:$0x1]
    %v61 = vunpack.c.l.b16 %v25
    %v62 = vunpack.c.l.b16 %v26
    %v63 = vpack.c.b16 %v62, %v61
    %v67 = vunpack.c.l.b16 %v33
    %v68 = vunpack.c.l.b16 %v34
    %v69 = vunpack.c.l.b16 %v35
    %v70 = vpack.c.b16 %v68, %v67
    %v71 = vpack.c.b16 %v69, %v69
    %vm73 = vcmask 195584
    %v75 = vsel %vm73, %v63, 0
    %vm77 = vcmask 1043456
    %v79 = vsel %vm77, %v71, 0
    %81 = vmatprep.subr.bf16.mxu0 0
    %82 = vmatpush1.bf16.msra.mxu0 %v70
    %83 = vmatprep.subr.bf16.mxu0 0
    %84 = vmatpush1.bf16.msra.mxu0 %v79
    %85 = vmatprep.subr.bf16.mxu0 0
    %86 = vmatpush1.bf16.msra.mxu0 0
    %87 = vmatprep.subr.bf16.mxu0 0
    %88 = vmatpush1.bf16.msra.mxu0 0
    %89 = vmatprep.subr.bf16.mxu0 0
    %90 = vmatpush1.bf16.msra.mxu0 0
    %91 = vmatprep.subr.bf16.mxu0 0
    %92 = vmatpush1.bf16.msra.mxu0 0
    %93 = vmatprep.subr.bf16.mxu0 0
    %94 = vmatpush1.bf16.msra.mxu0 0
    %95 = vmatprep.subr.bf16.mxu0 0
    %96 = vmatpush1.bf16.msra.mxu0 0
    %97 = vmatprep.subr.bf16.mxu0 0
    %98 = vmatpush1.bf16.msra.mxu0 0
    %99 = vmatprep.subr.bf16.mxu0 0
    %100 = vmatpush1.bf16.msra.mxu0 0
    %101 = vmatprep.subr.bf16.mxu0 0
    %102 = vmatpush1.bf16.msra.mxu0 0
    %103 = vmatprep.subr.bf16.mxu0 0
    %104 = vmatpush1.bf16.msra.mxu0 0
    %105 = vmatprep.subr.bf16.mxu0 0
    %106 = vmatpush1.bf16.msra.mxu0 0
    %107 = vmatprep.subr.bf16.mxu0 0
    %108 = vmatpush1.bf16.msra.mxu0 0
    %109 = vmatprep.subr.bf16.mxu0 0
    %110 = vmatpush1.bf16.msra.mxu0 0
    %111 = vmatprep.subr.bf16.mxu0 0
    %112 = vmatpush1.bf16.msra.mxu0 0
    %113 = vmatprep.mubr.bf16.mxu0 0
    %114 = vmatmul.mubr.bf16.gmra.mrb[0].mxu0 %v75
    %v115 = vpop.f32.mrb[0].mxu0
    %v116 = vadd.f32 0.0, %v115
    %v117 = vpop.f32.mrb[0].mxu0
    %v118 = vpop.f32.mrb[0].mxu0
    %v119 = vadd.f32 0.0, %v118
    %v120 = vpop.f32.mrb[0].mxu0
    %121 = vdwg.mxu0
    %123 = vset.pattern.permute.xlu0 0
    %124 = vperm.xlu0 %123, %v28
    %v125 = vpop.permute.xlu0 %124
    %128 = vset.pattern.permute.xlu0 0
    %129 = vperm.xlu0 %128, %v29
    %v130 = vpop.permute.xlu0 %129
    %v132 = vmul.f32 %v116, %v125
    %v133 = vmul.f32 %v119, %v130
    %v134 = vpack.c.bf16 %v133, %v132
    %v139 = vunpack.c.l.b16 %v40
    %v140 = vunpack.c.l.b16 %v41
    %v141 = vunpack.c.l.b16 %v42
    %v142 = vunpack.c.l.b16 %v43
    %v143 = vpack.c.b16 %v140, %v139
    %v144 = vpack.c.b16 %v142, %v141
    %vm147 = vcmask 261120
    %v149 = vsel %vm147, %v134, 0
    %151 = vmatprep.subr.bf16.mxu0 0
    %152 = vmatpush1.bf16.msra.mxu0 %v143
    %153 = vmatprep.subr.bf16.mxu0 0
    %154 = vmatpush1.bf16.msra.mxu0 %v144
    %155 = vmatprep.subr.bf16.mxu0 0
    %156 = vmatpush1.bf16.msra.mxu0 0
    %157 = vmatprep.subr.bf16.mxu0 0
    %158 = vmatpush1.bf16.msra.mxu0 0
    %159 = vmatprep.subr.bf16.mxu0 0
    %160 = vmatpush1.bf16.msra.mxu0 0
    %161 = vmatprep.subr.bf16.mxu0 0
    %162 = vmatpush1.bf16.msra.mxu0 0
    %163 = vmatprep.subr.bf16.mxu0 0
    %164 = vmatpush1.bf16.msra.mxu0 0
    %165 = vmatprep.subr.bf16.mxu0 0
    %166 = vmatpush1.bf16.msra.mxu0 0
    %167 = vmatprep.subr.bf16.mxu0 0
    %168 = vmatpush1.bf16.msra.mxu0 0
    %169 = vmatprep.subr.bf16.mxu0 0
    %170 = vmatpush1.bf16.msra.mxu0 0
    %171 = vmatprep.subr.bf16.mxu0 0
    %172 = vmatpush1.bf16.msra.mxu0 0
    %173 = vmatprep.subr.bf16.mxu0 0
    %174 = vmatpush1.bf16.msra.mxu0 0
    %175 = vmatprep.subr.bf16.mxu0 0
    %176 = vmatpush1.bf16.msra.mxu0 0
    %177 = vmatprep.subr.bf16.mxu0 0
    %178 = vmatpush1.bf16.msra.mxu0 0
    %179 = vmatprep.subr.bf16.mxu0 0
    %180 = vmatpush1.bf16.msra.mxu0 0
    %181 = vmatprep.subr.bf16.mxu0 0
    %182 = vmatpush1.bf16.msra.mxu0 0
    %183 = vmatprep.mubr.bf16.mxu0 0
    %184 = vmatmul.mubr.bf16.gmra.mrb[0].mxu0 %v149
    %v185 = vpop.f32.mrb[0].mxu0
    %v186 = vadd.f32 0.0, %v185
    %v187 = vpop.f32.mrb[0].mxu0
    %v188 = vpop.f32.mrb[0].mxu0
    %v189 = vadd.f32 0.0, %v188
    %v190 = vpop.f32.mrb[0].mxu0
    %191 = vdwg.mxu0
    %v194 = vunpack.c.l.b16 %v31
    %v195 = vunpack.c.l.b16 %v32
    %v196 = vpack.c.b16 %v195, %v194
    %v201 = vunpack.c.l.b16 %v36
    %v202 = vunpack.c.l.b16 %v37
    %v203 = vunpack.c.l.b16 %v38
    %v204 = vunpack.c.l.b16 %v39
    %v205 = vpack.c.b16 %v202, %v201
    %v206 = vpack.c.b16 %v204, %v203
    %v210 = vsel %vm147, %v196, 0
    %212 = vmatprep.subr.bf16.mxu0 0
    %213 = vmatpush1.bf16.msra.mxu0 %v205
    %214 = vmatprep.subr.bf16.mxu0 0
    %215 = vmatpush1.bf16.msra.mxu0 %v206
    %216 = vmatprep.subr.bf16.mxu0 0
    %217 = vmatpush1.bf16.msra.mxu0 0
    %218 = vmatprep.subr.bf16.mxu0 0
    %219 = vmatpush1.bf16.msra.mxu0 0
    %220 = vmatprep.subr.bf16.mxu0 0
    %221 = vmatpush1.bf16.msra.mxu0 0
    %222 = vmatprep.subr.bf16.mxu0 0
    %223 = vmatpush1.bf16.msra.mxu0 0
    %224 = vmatprep.subr.bf16.mxu0 0
    %225 = vmatpush1.bf16.msra.mxu0 0
    %226 = vmatprep.subr.bf16.mxu0 0
    %227 = vmatpush1.bf16.msra.mxu0 0
    %228 = vmatprep.subr.bf16.mxu0 0
    %229 = vmatpush1.bf16.msra.mxu0 0
    %230 = vmatprep.subr.bf16.mxu0 0
    %231 = vmatpush1.bf16.msra.mxu0 0
    %232 = vmatprep.subr.bf16.mxu0 0
    %233 = vmatpush1.bf16.msra.mxu0 0
    %234 = vmatprep.subr.bf16.mxu0 0
    %235 = vmatpush1.bf16.msra.mxu0 0
    %236 = vmatprep.subr.bf16.mxu0 0
    %237 = vmatpush1.bf16.msra.mxu0 0
    %238 = vmatprep.subr.bf16.mxu0 0
    %239 = vmatpush1.bf16.msra.mxu0 0
    %240 = vmatprep.subr.bf16.mxu0 0
    %241 = vmatpush1.bf16.msra.mxu0 0
    %242 = vmatprep.subr.bf16.mxu0 0
    %243 = vmatpush1.bf16.msra.mxu0 0
    %244 = vmatprep.mubr.bf16.mxu0 0
    %245 = vmatmul.mubr.bf16.gmra.mrb[0].mxu0 %v210
    %v246 = vpop.f32.mrb[0].mxu0
    %v247 = vadd.f32 %v186, %v246
    %v248 = vpop.f32.mrb[0].mxu0
    %v249 = vpop.f32.mrb[0].mxu0
    %v250 = vadd.f32 %v189, %v249
    %v251 = vpop.f32.mrb[0].mxu0
    %252 = vdwg.mxu0
    %v253 = vlaneseq
    %v254 = vshrl.u32 %v253, 7
    %v255 = vsub.s32 0, %v254
    %v256 = vrot.slane %v56, %v255
    %v257 = vadd.f32 %v247, %v256
    %v258 = vadd.f32 %v250, %v256
    %v259 = vmax.f32 %v257, 0.0
    %v260 = vmax.f32 %v258, 0.0
    %vm262 = vcmask 130048
    %v264 = vsel %vm262, %v27, 0
    %266 = vmatprep.subr.bf16.mxu0 0
    %267 = vmatpush1.bf16.msra.mxu0 %v196
    %268 = vmatprep.subr.bf16.mxu0 0
    %269 = vmatpush1.bf16.msra.mxu0 0
    %270 = vmatprep.subr.bf16.mxu0 0
    %271 = vmatpush1.bf16.msra.mxu0 0
    %272 = vmatprep.subr.bf16.mxu0 0
    %273 = vmatpush1.bf16.msra.mxu0 0
    %274 = vmatprep.subr.bf16.mxu0 0
    %275 = vmatpush1.bf16.msra.mxu0 0
    %276 = vmatprep.subr.bf16.mxu0 0
    %277 = vmatpush1.bf16.msra.mxu0 0
    %278 = vmatprep.subr.bf16.mxu0 0
    %279 = vmatpush1.bf16.msra.mxu0 0
    %280 = vmatprep.subr.bf16.mxu0 0
    %281 = vmatpush1.bf16.msra.mxu0 0
    %282 = vmatprep.subr.bf16.mxu0 0
    %283 = vmatpush1.bf16.msra.mxu0 0
    %284 = vmatprep.subr.bf16.mxu0 0
    %285 = vmatpush1.bf16.msra.mxu0 0
    %286 = vmatprep.subr.bf16.mxu0 0
    %287 = vmatpush1.bf16.msra.mxu0 0
    %288 = vmatprep.subr.bf16.mxu0 0
    %289 = vmatpush1.bf16.msra.mxu0 0
    %290 = vmatprep.subr.bf16.mxu0 0
    %291 = vmatpush1.bf16.msra.mxu0 0
    %292 = vmatprep.subr.bf16.mxu0 0
    %293 = vmatpush1.bf16.msra.mxu0 0
    %294 = vmatprep.subr.bf16.mxu0 0
    %295 = vmatpush1.bf16.msra.mxu0 0
    %296 = vmatprep.subr.bf16.mxu0 0
    %297 = vmatpush1.bf16.msra.mxu0 0
    %298 = vmatprep.mubr.bf16.mxu0 0
    %299 = vmatmul.mubr.bf16.gmra.mrb[0].mxu0 %v264
    %v300 = vpop.f32.mrb[0].mxu0
    %v301 = vadd.f32 0.0, %v300
    %v302 = vpop.f32.mrb[0].mxu0
    %v303 = vpop.f32.mrb[0].mxu0
    %v304 = vpop.f32.mrb[0].mxu0
    %305 = vdwg.mxu0
    %307 = vset.pattern.permute.xlu0 0
    %308 = vperm.xlu0 %307, %v30
    %v309 = vpop.permute.xlu0 %308
    %v311 = vmul.f32 %v301, %v309
    %v312 = vpack.c.bf16 %v311, %v311
    %v313 = vlaneseq
    %v314 = vshrl.u32 %v313, 7
    %v315 = vsub.s32 0, %v314
    %v316 = vrot.slane %v57, %v315
    %v321 = vunpack.c.l.b16 %v44
    %v322 = vunpack.c.l.b16 %v45
    %v323 = vunpack.c.l.b16 %v46
    %v324 = vunpack.c.l.b16 %v47
    %v325 = vpack.c.b16 %v322, %v321
    %v326 = vpack.c.b16 %v324, %v323
    %v330 = vsel %vm147, %v312, 0
    %332 = vmatprep.subr.bf16.mxu0 0
    %333 = vmatpush1.bf16.msra.mxu0 %v325
    %334 = vmatprep.subr.bf16.mxu0 0
    %335 = vmatpush1.bf16.msra.mxu0 %v326
    %336 = vmatprep.subr.bf16.mxu0 0
    %337 = vmatpush1.bf16.msra.mxu0 0
    %338 = vmatprep.subr.bf16.mxu0 0
    %339 = vmatpush1.bf16.msra.mxu0 0
    %340 = vmatprep.subr.bf16.mxu0 0
    %341 = vmatpush1.bf16.msra.mxu0 0
    %342 = vmatprep.subr.bf16.mxu0 0
    %343 = vmatpush1.bf16.msra.mxu0 0
    %344 = vmatprep.subr.bf16.mxu0 0
    %345 = vmatpush1.bf16.msra.mxu0 0
    %346 = vmatprep.subr.bf16.mxu0 0
    %347 = vmatpush1.bf16.msra.mxu0 0
    %348 = vmatprep.subr.bf16.mxu0 0
    %349 = vmatpush1.bf16.msra.mxu0 0
    %350 = vmatprep.subr.bf16.mxu0 0
    %351 = vmatpush1.bf16.msra.mxu0 0
    %352 = vmatprep.subr.bf16.mxu0 0
    %353 = vmatpush1.bf16.msra.mxu0 0
    %354 = vmatprep.subr.bf16.mxu0 0
    %355 = vmatpush1.bf16.msra.mxu0 0
    %356 = vmatprep.subr.bf16.mxu0 0
    %357 = vmatpush1.bf16.msra.mxu0 0
    %358 = vmatprep.subr.bf16.mxu0 0
    %359 = vmatpush1.bf16.msra.mxu0 0
    %360 = vmatprep.subr.bf16.mxu0 0
    %361 = vmatpush1.bf16.msra.mxu0 0
    %362 = vmatprep.subr.bf16.mxu0 0
    %363 = vmatpush1.bf16.msra.mxu0 0
    %364 = vmatprep.mubr.bf16.mxu0 0
    %365 = vmatmul.mubr.bf16.gmra.mrb[0].mxu0 %v330
    %v366 = vpop.f32.mrb[0].mxu0
    %v367 = vadd.f32 %v316, %v366
    %v368 = vpop.f32.mrb[0].mxu0
    %v369 = vpop.f32.mrb[0].mxu0
    %v370 = vpop.f32.mrb[0].mxu0
    %371 = vdwg.mxu0
    %v372 = vmax.f32 %v367, 0.0
    %373 = vmatprep.subr.mxu0 0.0
    %374 = vmatpush1.msra.mxu0 %v259
    %375 = vmatprep.subr.mxu0 0.0
    %376 = vmatpush1.msra.mxu0 %v260
    %377 = vmatprep.subr.mxu0 0.0
    %378 = vmatpush1.msra.mxu0 0.0
    %379 = vmatprep.subr.mxu0 0.0
    %380 = vmatpush1.msra.mxu0 0.0
    %381 = vmatprep.subr.mxu0 0.0
    %382 = vmatpush1.msra.mxu0 0.0
    %383 = vmatprep.subr.mxu0 0.0
    %384 = vmatpush1.msra.mxu0 0.0
    %385 = vmatprep.subr.mxu0 0.0
    %386 = vmatpush1.msra.mxu0 0.0
    %387 = vmatprep.subr.mxu0 0.0
    %388 = vmatpush1.msra.mxu0 0.0
    %389 = vmatprep.subr.mxu0 0.0
    %390 = vmatpush1.msra.mxu0 0.0
    %391 = vmatprep.subr.mxu0 0.0
    %392 = vmatpush1.msra.mxu0 0.0
    %393 = vmatprep.subr.mxu0 0.0
    %394 = vmatpush1.msra.mxu0 0.0
    %395 = vmatprep.subr.mxu0 0.0
    %396 = vmatpush1.msra.mxu0 0.0
    %397 = vmatprep.subr.mxu0 0.0
    %398 = vmatpush1.msra.mxu0 0.0
    %399 = vmatprep.subr.mxu0 0.0
    %400 = vmatpush1.msra.mxu0 0.0
    %401 = vmatprep.subr.mxu0 0.0
    %402 = vmatpush1.msra.mxu0 0.0
    %403 = vmatprep.subr.mxu0 0.0
    %404 = vmatpush1.msra.mxu0 0.0
    %405 = vmatprep.subr.mxu0 0.0
    %406 = vmatpush1.msra.mxu0 0.0
    %407 = vmatprep.subr.mxu0 0.0
    %408 = vmatpush1.msra.mxu0 0.0
    %409 = vmatprep.subr.mxu0 0.0
    %410 = vmatpush1.msra.mxu0 0.0
    %411 = vmatprep.subr.mxu0 0.0
    %412 = vmatpush1.msra.mxu0 0.0
    %413 = vmatprep.subr.mxu0 0.0
    %414 = vmatpush1.msra.mxu0 0.0
    %415 = vmatprep.subr.mxu0 0.0
    %416 = vmatpush1.msra.mxu0 0.0
    %417 = vmatprep.subr.mxu0 0.0
    %418 = vmatpush1.msra.mxu0 0.0
    %419 = vmatprep.subr.mxu0 0.0
    %420 = vmatpush1.msra.mxu0 0.0
    %421 = vmatprep.subr.mxu0 0.0
    %422 = vmatpush1.msra.mxu0 0.0
    %423 = vmatprep.subr.mxu0 0.0
    %424 = vmatpush1.msra.mxu0 0.0
    %425 = vmatprep.subr.mxu0 0.0
    %426 = vmatpush1.msra.mxu0 0.0
    %427 = vmatprep.subr.mxu0 0.0
    %428 = vmatpush1.msra.mxu0 0.0
    %429 = vmatprep.subr.mxu0 0.0
    %430 = vmatpush1.msra.mxu0 0.0
    %431 = vmatprep.subr.mxu0 0.0
    %432 = vmatpush1.msra.mxu0 0.0
    %433 = vmatprep.subr.mxu0 0.0
    %434 = vmatpush1.msra.mxu0 0.0
    %435 = vmatprep.subr.mxu0 0.0
    %436 = vmatpush1.msra.mxu0 0.0
    %437 = vmatprep.mubr.bf16.mxu0 0
    %438 = vmatmul.mubr.bf16.gmra.mrb[0].mxu0 %v264
    %v439 = vpop.f32.mrb[0].mxu0
    %v440 = vadd.f32 0.0, %v439
    %v441 = vpop.f32.mrb[0].mxu0
    %v442 = vpop.f32.mrb[0].mxu0
    %v443 = vpop.f32.mrb[0].mxu0
    %444 = vdwg.mxu0
    %v445 = vmul.f32 %v440, %v309
    %v446 = vpack.c.bf16 %v445, %v445
    %v447 = vpack.c.bf16 %v372, %v372
    %v452 = vunpack.c.l.b16 %v52
    %v453 = vunpack.c.l.b16 %v53
    %v454 = vunpack.c.l.b16 %v54
    %v455 = vunpack.c.l.b16 %v55
    %v456 = vpack.c.b16 %v453, %v452
    %v457 = vpack.c.b16 %v455, %v454
    %v461 = vsel %vm147, %v447, 0
    %463 = vmatprep.subr.bf16.mxu0 0
    %464 = vmatpush1.bf16.msra.mxu0 %v456
    %465 = vmatprep.subr.bf16.mxu0 0
    %466 = vmatpush1.bf16.msra.mxu0 %v457
    %467 = vmatprep.subr.bf16.mxu0 0
    %468 = vmatpush1.bf16.msra.mxu0 0
    %469 = vmatprep.subr.bf16.mxu0 0
    %470 = vmatpush1.bf16.msra.mxu0 0
    %471 = vmatprep.subr.bf16.mxu0 0
    %472 = vmatpush1.bf16.msra.mxu0 0
    %473 = vmatprep.subr.bf16.mxu0 0
    %474 = vmatpush1.bf16.msra.mxu0 0
    %475 = vmatprep.subr.bf16.mxu0 0
    %476 = vmatpush1.bf16.msra.mxu0 0
    %477 = vmatprep.subr.bf16.mxu0 0
    %478 = vmatpush1.bf16.msra.mxu0 0
    %479 = vmatprep.subr.bf16.mxu0 0
    %480 = vmatpush1.bf16.msra.mxu0 0
    %481 = vmatprep.subr.bf16.mxu0 0
    %482 = vmatpush1.bf16.msra.mxu0 0
    %483 = vmatprep.subr.bf16.mxu0 0
    %484 = vmatpush1.bf16.msra.mxu0 0
    %485 = vmatprep.subr.bf16.mxu0 0
    %486 = vmatpush1.bf16.msra.mxu0 0
    %487 = vmatprep.subr.bf16.mxu0 0
    %488 = vmatpush1.bf16.msra.mxu0 0
    %489 = vmatprep.subr.bf16.mxu0 0
    %490 = vmatpush1.bf16.msra.mxu0 0
    %491 = vmatprep.subr.bf16.mxu0 0
    %492 = vmatpush1.bf16.msra.mxu0 0
    %493 = vmatprep.subr.bf16.mxu0 0
    %494 = vmatpush1.bf16.msra.mxu0 0
    %495 = vmatprep.mubr.bf16.mxu0 0
    %496 = vmatmul.mubr.bf16.gmra.mrb[0].mxu0 %v461
    %v497 = vpop.f32.mrb[0].mxu0
    %v498 = vadd.f32 0.0, %v497
    %v499 = vpop.f32.mrb[0].mxu0
    %v500 = vpop.f32.mrb[0].mxu0
    %v501 = vpop.f32.mrb[0].mxu0
    %502 = vdwg.mxu0
    %v507 = vunpack.c.l.b16 %v48
    %v508 = vunpack.c.l.b16 %v49
    %v509 = vunpack.c.l.b16 %v50
    %v510 = vunpack.c.l.b16 %v51
    %v511 = vpack.c.b16 %v508, %v507
    %v512 = vpack.c.b16 %v510, %v509
    %v516 = vsel %vm147, %v446, 0
    %518 = vmatprep.subr.bf16.mxu0 0
    %519 = vmatpush1.bf16.msra.mxu0 %v511
    %520 = vmatprep.subr.bf16.mxu0 0
    %521 = vmatpush1.bf16.msra.mxu0 %v512
    %522 = vmatprep.subr.bf16.mxu0 0
    %523 = vmatpush1.bf16.msra.mxu0 0
    %524 = vmatprep.subr.bf16.mxu0 0
    %525 = vmatpush1.bf16.msra.mxu0 0
    %526 = vmatprep.subr.bf16.mxu0 0
    %527 = vmatpush1.bf16.msra.mxu0 0
    %528 = vmatprep.subr.bf16.mxu0 0
    %529 = vmatpush1.bf16.msra.mxu0 0
    %530 = vmatprep.subr.bf16.mxu0 0
    %531 = vmatpush1.bf16.msra.mxu0 0
    %532 = vmatprep.subr.bf16.mxu0 0
    %533 = vmatpush1.bf16.msra.mxu0 0
    %534 = vmatprep.subr.bf16.mxu0 0
    %535 = vmatpush1.bf16.msra.mxu0 0
    %536 = vmatprep.subr.bf16.mxu0 0
    %537 = vmatpush1.bf16.msra.mxu0 0
    %538 = vmatprep.subr.bf16.mxu0 0
    %539 = vmatpush1.bf16.msra.mxu0 0
    %540 = vmatprep.subr.bf16.mxu0 0
    %541 = vmatpush1.bf16.msra.mxu0 0
    %542 = vmatprep.subr.bf16.mxu0 0
    %543 = vmatpush1.bf16.msra.mxu0 0
    %544 = vmatprep.subr.bf16.mxu0 0
    %545 = vmatpush1.bf16.msra.mxu0 0
    %546 = vmatprep.subr.bf16.mxu0 0
    %547 = vmatpush1.bf16.msra.mxu0 0
    %548 = vmatprep.subr.bf16.mxu0 0
    %549 = vmatpush1.bf16.msra.mxu0 0
    %550 = vmatprep.mubr.bf16.mxu0 0
    %551 = vmatmul.mubr.bf16.gmra.mrb[0].mxu0 %v516
    %v552 = vpop.f32.mrb[0].mxu0
    %v553 = vadd.f32 %v498, %v552
    %v554 = vpop.f32.mrb[0].mxu0
    %v555 = vpop.f32.mrb[0].mxu0
    %v556 = vpop.f32.mrb[0].mxu0
    %557 = vdwg.mxu0
    %v558 = vld [vmem:[%s5] sm:$0xf]
    %v559 = vld [vmem:[%s5 + $0x4] sm:$0xf]
    %v560 = vld [vmem:[%s5 + $0x8] sm:$0xf]
    %v561 = vld [vmem:[%s5 + $0xc] sm:$0xf]
    %v562 = vpack.c.bf16 %v553, %v553
    %v563 = vlaneseq
    %v564 = vshrl.u32 %v563, 7
    %v565 = vsub.s32 0, %v564
    %v566 = vrot.slane %v58, %v565
    %v571 = vunpack.c.l.b16 %v558
    %v572 = vunpack.c.l.b16 %v559
    %v573 = vunpack.c.l.b16 %v560
    %v574 = vunpack.c.l.b16 %v561
    %v575 = vpack.c.b16 %v572, %v571
    %v576 = vpack.c.b16 %v574, %v573
    %v580 = vsel %vm147, %v562, 0
    %582 = vmatprep.subr.bf16.mxu0 0
    %583 = vmatpush1.bf16.msra.mxu0 %v575
    %584 = vmatprep.subr.bf16.mxu0 0
    %585 = vmatpush1.bf16.msra.mxu0 %v576
    %586 = vmatprep.subr.bf16.mxu0 0
    %587 = vmatpush1.bf16.msra.mxu0 0
    %588 = vmatprep.subr.bf16.mxu0 0
    %589 = vmatpush1.bf16.msra.mxu0 0
    %590 = vmatprep.subr.bf16.mxu0 0
    %591 = vmatpush1.bf16.msra.mxu0 0
    %592 = vmatprep.subr.bf16.mxu0 0
    %593 = vmatpush1.bf16.msra.mxu0 0
    %594 = vmatprep.subr.bf16.mxu0 0
    %595 = vmatpush1.bf16.msra.mxu0 0
    %596 = vmatprep.subr.bf16.mxu0 0
    %597 = vmatpush1.bf16.msra.mxu0 0
    %598 = vmatprep.subr.bf16.mxu0 0
    %599 = vmatpush1.bf16.msra.mxu0 0
    %600 = vmatprep.subr.bf16.mxu0 0
    %601 = vmatpush1.bf16.msra.mxu0 0
    %602 = vmatprep.subr.bf16.mxu0 0
    %603 = vmatpush1.bf16.msra.mxu0 0
    %604 = vmatprep.subr.bf16.mxu0 0
    %605 = vmatpush1.bf16.msra.mxu0 0
    %606 = vmatprep.subr.bf16.mxu0 0
    %607 = vmatpush1.bf16.msra.mxu0 0
    %608 = vmatprep.subr.bf16.mxu0 0
    %609 = vmatpush1.bf16.msra.mxu0 0
    %610 = vmatprep.subr.bf16.mxu0 0
    %611 = vmatpush1.bf16.msra.mxu0 0
    %612 = vmatprep.subr.bf16.mxu0 0
    %613 = vmatpush1.bf16.msra.mxu0 0
    %614 = vmatprep.mubr.bf16.mxu0 0
    %615 = vmatmul.mubr.bf16.gmra.mrb[0].mxu0 %v580
    %v616 = vpop.f32.mrb[0].mxu0
    %v617 = vadd.f32 %v566, %v616
    %v618 = vpop.f32.mrb[0].mxu0
    %v619 = vpop.f32.mrb[0].mxu0
    %v620 = vpop.f32.mrb[0].mxu0
    %621 = vdwg.mxu0
    %622 = vst [vmem:[#allocation2] sm:$0xff] %v617
    // Predicated region
    $region26: #{tpu_custom_call.1} parent=1 // pred_check
      _
    $region27: #{tpu_custom_call.1} parent=1 // pred_check_branch
      %624 = sbr.rel (0) target = $region29
    $region28: #{tpu_custom_call.1} parent=1 // pred_region
      %s626 = ssub.s32 128, 128
      %627 = vsyncadd [#allocation3], %s626
      %s629 = sshll.u32 [#allocation2], 4
      %s630 = int_to_ptr.vmem [resolvable:$true] %s629
      %632 = dma.vmem_to_hbm [thread:$0]  %s630, 128, %s6, [#allocation3]
    $region29: #{tpu_custom_call.1} parent=1 // pred_fallthru
      _
    // Predicated region
    $region30: #{tpu_custom_call.1} parent=1 // pred_check
      _
    $region31: #{tpu_custom_call.1} parent=1 // pred_check_branch
      %634 = sbr.rel (0) target = $region33
    $region32: #{tpu_custom_call.1} parent=1 // pred_region
      %635 = dma.done [#allocation3], 128
    $region33: #{tpu_custom_call.1} parent=1 // pred_fallthru
      _
    %636 = vsyncpa [#allocation3], 1

</llo_original>
